<compile_context>
chip_gen: v7x
topology: tpu7x:2x2x1
jax: 0.10.0
libtpu: 0.0.40
codegen_flags: <defaults>
</compile_context>

<pallas_src>
import functools

import jax
import jax.numpy as jnp
from jax import lax
from jax.experimental import pallas as pl
from jax.experimental.pallas import tpu as pltpu

INPUT_SIZE = 300
OUTPUT_SIZE = 2
OUT_PAD = 8          # sublane-aligned padded output rows (real outputs: first 2)
MAX_TILE_B = 4096    # max batch rows per grid step (multiple of 128)
SMALL_B = 256        # at/below this, use a single full-extent block (no padding)


def linear_kernel(x_ref, w_ref, b_ref, o_ref):
    # x_ref: (tile_b, IN), w_ref: (OUT_PAD, IN), b_ref: (OUT_PAD, 1),
    # o_ref: (OUT_PAD, tile_b)  -- batch in lanes => lane-dense unmasked stores.
    acc = lax.dot_general(
        w_ref[...], x_ref[...],
        dimension_numbers=(((1,), (1,)), ((), ())),   # contract K on both (RHS transposed)
        preferred_element_type=jnp.float32,
    )
    o_ref[...] = (acc + b_ref[...]).astype(o_ref.dtype)


def _round_up(n, m):
    return ((n + m - 1) // m) * m


def prepare_params(weight, bias):
    """Pad nn.Linear params once (hoisted out of the per-call path).

    weight: (OUTPUT_SIZE, INPUT_SIZE), bias: (OUTPUT_SIZE,)
    returns w_pad: (OUT_PAD, INPUT_SIZE), b_pad: (OUT_PAD, 1), both float32.
    """
    out_size, in_size = weight.shape
    w_pad = jnp.zeros((OUT_PAD, in_size), jnp.float32).at[:out_size, :].set(weight)
    b_pad = jnp.zeros((OUT_PAD, 1), jnp.float32).at[:out_size, 0].set(bias)
    return w_pad, b_pad


def _choose_tiling(B):
    """Pick (tile_b, b_total). Multi-tile path requires tile_b % 128 == 0 (lane dim)."""
    if _round_up(B, 8) <= SMALL_B:
        return B, B                                  # single full-extent block, zero padding
    best_tile, best_total = 128, _round_up(B, 128)   # fallback: smallest legal lane tile
    for tile in range(128, MAX_TILE_B + 1, 128):
        total = _round_up(B, tile)
        if total // tile < 2:                        # keep grid >= 2 (both v7x TCs busy)
            continue
        if (total - B) * 10 <= total:                # padding waste <= 10% (x reads are pure loss)
            best_tile, best_total = tile, total
    return best_tile, best_total


@functools.partial(jax.jit, static_argnames=("out_size",))
def _forward(x, w_pad, b_pad, *, out_size):
    B, in_size = x.shape
    tile_b, b_total = _choose_tiling(B)
    if b_total != B:
        x = jnp.pad(x, ((0, b_total - B), (0, 0)))
    grid = (b_total // tile_b,)

    out_t = pl.pallas_call(
        linear_kernel,
        out_shape=jax.ShapeDtypeStruct((OUT_PAD, b_total), jnp.float32),
        grid=grid,
        in_specs=[
            pl.BlockSpec((tile_b, in_size), lambda i: (i, 0)),    # x: one batch tile per step
            pl.BlockSpec((OUT_PAD, in_size), lambda i: (0, 0)),   # weight: resident
            pl.BlockSpec((OUT_PAD, 1), lambda i: (0, 0)),         # bias: resident
        ],
        out_specs=pl.BlockSpec((OUT_PAD, tile_b), lambda i: (0, i)),
        compiler_params=pltpu.CompilerParams(
            dimension_semantics=("parallel",),
        ),
    )(x, w_pad, b_pad)

    # (OUT_PAD, b_total) -> (B, out_size): cheap slice + transpose on a tiny slab.
    return out_t[:out_size, :B].T


def problem_classifier_forward(x, weight, bias):
    """Equivalent to PyTorch nn.Linear: x @ weight.T + bias."""
    w_pad, b_pad = prepare_params(weight, bias)
    return _forward(x, w_pad, b_pad, out_size=weight.shape[0])


if __name__ == "__main__":
    key = jax.random.PRNGKey(0)
    kx, kw, kb, kx2, kx3 = jax.random.split(key, 5)

    # Deterministic parameter init (mimics nn.Linear's uniform(-1/sqrt(in), 1/sqrt(in))).
    bound = 1.0 / (INPUT_SIZE ** 0.5)
    weight = jax.random.uniform(
        kw, (OUTPUT_SIZE, INPUT_SIZE), dtype=jnp.float32, minval=-bound, maxval=bound
    )
    bias = jax.random.uniform(
        kb, (OUTPUT_SIZE,), dtype=jnp.float32, minval=-bound, maxval=bound
    )

    # Hoisted parameter padding (done once, reused for every forward call).
    w_pad, b_pad = prepare_params(weight, bias)

    # Small demo batch: single full-extent block, zero padding.
    B = 8
    x = jax.random.normal(kx, (B, INPUT_SIZE), dtype=jnp.float32)
    out = jax.block_until_ready(_forward(x, w_pad, b_pad, out_size=OUTPUT_SIZE))
    ref = x @ weight.T + bias
    assert out.shape == (B, OUTPUT_SIZE)
    assert jnp.allclose(out, ref, atol=1e-4, rtol=1e-4)

    # Mid-size batch: exercises the multi-tile fallback path (tile=128, grid=3).
    B2 = 300
    x2 = jax.random.normal(kx2, (B2, INPUT_SIZE), dtype=jnp.float32)
    out2 = jax.block_until_ready(_forward(x2, w_pad, b_pad, out_size=OUTPUT_SIZE))
    ref2 = x2 @ weight.T + bias
    assert out2.shape == (B2, OUTPUT_SIZE)
    assert jnp.allclose(out2, ref2, atol=1e-4, rtol=1e-4)

    # Larger, non-multiple batch: exercises adaptive tile choice (tile=512, grid=2).
    B3 = 1000
    x3 = jax.random.normal(kx3, (B3, INPUT_SIZE), dtype=jnp.float32)
    out3 = jax.block_until_ready(problem_classifier_forward(x3, weight, bias))
    ref3 = x3 @ weight.T + bias
    assert out3.shape == (B3, OUTPUT_SIZE)
    assert jnp.allclose(out3, ref3, atol=1e-4, rtol=1e-4)

    print("KERNEL_OK")
</pallas_src>

<mosaic_0001>
module attributes {stable_mosaic.version = 11 : i64} {
  func.func @linear_kernel(%arg0: i32, %arg1: memref<8x300xf32, #tpu.memory_space<vmem>>, %arg2: memref<8x300xf32, #tpu.memory_space<vmem>>, %arg3: memref<8x1xf32, #tpu.memory_space<vmem>>, %arg4: memref<8x8xf32, #tpu.memory_space<vmem>>) attributes {dimension_semantics = [#tpu.dimension_semantics<parallel>], iteration_bounds = array<i64: 1>, scalar_prefetch = 0 : i64, scratch_operands = 0 : i64, tpu.core_type = #tpu.core_type<tc>, window_params = [{transform_indices = @transform_0, window_bounds = array<i64: 8, 300>}, {pipeline_mode = #tpu.pipeline_mode<synchronous>, transform_indices = @transform_1, window_bounds = array<i64: 8, 300>}, {pipeline_mode = #tpu.pipeline_mode<synchronous>, transform_indices = @transform_2, window_bounds = array<i64: 8, 1>}, {transform_indices = @transform_3, window_bounds = array<i64: 8, 8>}]} {
    %c0 = arith.constant 0 : index
    %c0_0 = arith.constant 0 : index
    %0 = vector.load %arg2[%c0, %c0_0] : memref<8x300xf32, #tpu.memory_space<vmem>>, vector<8x300xf32>
    %c0_1 = arith.constant 0 : index
    %c0_2 = arith.constant 0 : index
    %1 = vector.load %arg1[%c0_1, %c0_2] : memref<8x300xf32, #tpu.memory_space<vmem>>, vector<8x300xf32>
    %cst = arith.constant dense<0.000000e+00> : vector<8x8xf32>
    %2 = tpu.matmul %0, %1, %cst {dimension_numbers = #tpu.dot_dimension_numbers<[1], [1], [0], [0], [0, 0, 1, 0], [], []>} : vector<8x300xf32>, vector<8x300xf32>, vector<8x8xf32> -> vector<8x8xf32>
    %c0_3 = arith.constant 0 : index
    %c0_4 = arith.constant 0 : index
    %3 = vector.load %arg3[%c0_3, %c0_4] : memref<8x1xf32, #tpu.memory_space<vmem>>, vector<8x1xf32>
    %4 = vector.broadcast %3 : vector<8x1xf32> to vector<8x8xf32>
    %5 = arith.addf %2, %4 : vector<8x8xf32>
    %c0_5 = arith.constant 0 : index
    %c0_6 = arith.constant 0 : index
    %6 = vector.load %arg4[%c0_5, %c0_6] : memref<8x8xf32, #tpu.memory_space<vmem>>, vector<8x8xf32>
    tpu.vector_store %arg4[%c0_5, %c0_6], %5 {strides = array<i32>} : memref<8x8xf32, #tpu.memory_space<vmem>>, vector<8x8xf32>,
    return
  }
  func.func @transform_0(%arg0: i32) -> (i32, i32) {
    %c0_i32 = arith.constant 0 : i32
    %c0_i32_0 = arith.constant 0 : i32
    return %arg0, %c0_i32 : i32, i32
  }
  func.func @transform_1(%arg0: i32) -> (i32, i32) {
    %c0_i32 = arith.constant 0 : i32
    %c0_i32_0 = arith.constant 0 : i32
    %c0_i32_1 = arith.constant 0 : i32
    return %c0_i32, %c0_i32_0 : i32, i32
  }
  func.func @transform_2(%arg0: i32) -> (i32, i32) {
    %c0_i32 = arith.constant 0 : i32
    %c0_i32_0 = arith.constant 0 : i32
    %c0_i32_1 = arith.constant 0 : i32
    return %c0_i32, %c0_i32_0 : i32, i32
  }
  func.func @transform_3(%arg0: i32) -> (i32, i32) {
    %c0_i32 = arith.constant 0 : i32
    %c0_i32_0 = arith.constant 0 : i32
    return %c0_i32, %arg0 : i32, i32
  }
}

</mosaic_0001>

<llo_original>
// kernel: _forward.1
$region0: #{_forward.1}
  #allocation0 [shape = 'u32[]', space=smem, size = 0x4, offset = 0x4, fixed_abs, tag = 'smem constant byte address 0x4 - core index']
  #allocation1 [shape = 'u32[144,128]{1,0:T(1,128)}', space=vmem, size = 0x12000, scoped, tag = 'internal scratch']
  %s0 = inlined_call_operand.hbm [shape: f32[8,300], index: 0, kind: input, shape index: {}]
  %s1 = inlined_call_operand.hbm [shape: f32[8,300], index: 1, kind: input, shape index: {}]
  %s2 = inlined_call_operand.vmem [shape: f32[8,1], index: 2, kind: input, shape index: {}]
  %s3 = inlined_call_operand.vmem [shape: f32[8,8], index: 3, kind: output, shape index: {}]
  %s4 = sld [smem:[#allocation0]]
  $region30: #{_forward.1} parent=0
    _
  %s6 = ssub.s32 1, %s4
  %s7 = scalar_select 0, %s6, %s4
  $region1: #{_forward.1} parent=0
    #allocation2 [shape = 'u8[12288]{0}', space=vmem, size = 0x3000, scoped, tag = 'input window, operand 0, single buffered']
    #allocation3 [shape = 's32[1]{0}', space=sflag, size = 0x4, scoped, tag = 'scoped memory for _forward.1']
    #allocation4 [shape = 'u8[12288]{0}', space=vmem, size = 0x3000, scoped, tag = 'input window, operand 1, single buffered']
    #allocation5 [shape = 's32[1]{0}', space=sflag, size = 0x4, scoped, tag = 'scoped memory for _forward.1']
    %8 = vsyncpa [#allocation3], 0
    %9 = vsyncpa [#allocation5], 0
    // Predicated region
    $region2: #{_forward.1} parent=1 // pred_check
      _
    $region3: #{_forward.1} parent=1 // pred_check_branch
      %11 = sbr.rel (0) target = $region5
    $region4: #{_forward.1} parent=1 // pred_region
      %s13 = ssub.s32 384, 384
      %14 = vsyncadd [#allocation3], %s13
      %s16 = sshll.u32 [#allocation2], 4
      %s17 = int_to_ptr.vmem [resolvable:$true] %s16
      %19 = dma.hbm_to_vmem [thread:$0]  %s0, 384, %s17, [#allocation3]
    $region5: #{_forward.1} parent=1 // pred_fallthru
      _
    // Predicated region
    $region6: #{_forward.1} parent=1 // pred_check
      _
    $region7: #{_forward.1} parent=1 // pred_check_branch
      %21 = sbr.rel (0) target = $region9
    $region8: #{_forward.1} parent=1 // pred_region
      %s23 = ssub.s32 384, 384
      %24 = vsyncadd [#allocation5], %s23
      %s26 = sshll.u32 [#allocation4], 4
      %s27 = int_to_ptr.vmem [resolvable:$true] %s26
      %29 = dma.hbm_to_vmem [thread:$0]  %s1, 384, %s27, [#allocation5]
    $region9: #{_forward.1} parent=1 // pred_fallthru
      _
    // Predicated region
    $region10: #{_forward.1} parent=1 // pred_check
      _
    $region11: #{_forward.1} parent=1 // pred_check_branch
      %31 = sbr.rel (0) target = $region13
    $region12: #{_forward.1} parent=1 // pred_region
      _
    $region13: #{_forward.1} parent=1 // pred_fallthru
      _
    // Predicated region
    $region14: #{_forward.1} parent=1 // pred_check
      _
    $region15: #{_forward.1} parent=1 // pred_check_branch
      %33 = sbr.rel (0) target = $region17
    $region16: #{_forward.1} parent=1 // pred_region
      %34 = dma.done [#allocation3], 384
    $region17: #{_forward.1} parent=1 // pred_fallthru
      _
    // Predicated region
    $region18: #{_forward.1} parent=1 // pred_check
      _
    $region19: #{_forward.1} parent=1 // pred_check_branch
      %36 = sbr.rel (0) target = $region21
    $region20: #{_forward.1} parent=1 // pred_region
      %37 = dma.done [#allocation5], 384
    $region21: #{_forward.1} parent=1 // pred_fallthru
      _
    %v38 = vld [vmem:[#allocation4] sm:$0xff]
    %v39 = vld [vmem:[#allocation4 + $0x8] sm:$0xff]
    %v40 = vld [vmem:[#allocation4 + $0x10] sm:$0xff]
    %v41 = vld [vmem:[#allocation2] sm:$0xff]
    %v42 = vld [vmem:[#allocation2 + $0x8] sm:$0xff]
    %v43 = vld [vmem:[#allocation2 + $0x10] sm:$0xff]
    %v44 = vld [vmem:[%s2] sm:$0xff]
    %46 = vset.pattern.permute.xlu0 0
    %47 = vperm.xlu0 %46, %v44
    %v48 = vpop.permute.xlu0 %47
    %vm50 = vcmask 359424
    %v52 = vsel %vm50, %v40, 0
    %v55 = vsel %vm50, %v43, 0
    %57 = vmatprep.subr.mxu0 %v42
    %58 = vmatpush1.xpose.msra.mxu0 %v41
    %59 = vmatprep.subr.mxu0 0.0
    %60 = vmatpush1.xpose.msra.mxu0 0.0
    %61 = vmatprep.subr.mxu0 0.0
    %62 = vmatpush1.xpose.msra.mxu0 0.0
    %63 = vmatprep.subr.mxu0 0.0
    %64 = vmatpush1.xpose.msra.mxu0 0.0
    %65 = vmatprep.subr.mxu0 0.0
    %66 = vmatpush1.xpose.msra.mxu0 0.0
    %67 = vmatprep.subr.mxu0 0.0
    %68 = vmatpush1.xpose.msra.mxu0 0.0
    %69 = vmatprep.subr.mxu0 0.0
    %70 = vmatpush1.xpose.msra.mxu0 0.0
    %71 = vmatprep.subr.mxu0 0.0
    %72 = vmatpush1.xpose.msra.mxu0 0.0
    %73 = vmatprep.subr.mxu0 0.0
    %74 = vmatpush1.xpose.msra.mxu0 0.0
    %75 = vmatprep.subr.mxu0 0.0
    %76 = vmatpush1.xpose.msra.mxu0 0.0
    %77 = vmatprep.subr.mxu0 0.0
    %78 = vmatpush1.xpose.msra.mxu0 0.0
    %79 = vmatprep.subr.mxu0 0.0
    %80 = vmatpush1.xpose.msra.mxu0 0.0
    %81 = vmatprep.subr.mxu0 0.0
    %82 = vmatpush1.xpose.msra.mxu0 0.0
    %83 = vmatprep.subr.mxu0 0.0
    %84 = vmatpush1.xpose.msra.mxu0 0.0
    %85 = vmatprep.subr.mxu0 0.0
    %86 = vmatpush1.xpose.msra.mxu0 0.0
    %87 = vmatprep.subr.mxu0 0.0
    %88 = vmatpush1.xpose.msra.mxu0 0.0
    %89 = vmatprep.subr.mxu0 0.0
    %90 = vmatpush1.xpose.msra.mxu0 0.0
    %91 = vmatprep.subr.mxu0 0.0
    %92 = vmatpush1.xpose.msra.mxu0 0.0
    %93 = vmatprep.subr.mxu0 0.0
    %94 = vmatpush1.xpose.msra.mxu0 0.0
    %95 = vmatprep.subr.mxu0 0.0
    %96 = vmatpush1.xpose.msra.mxu0 0.0
    %97 = vmatprep.subr.mxu0 0.0
    %98 = vmatpush1.xpose.msra.mxu0 0.0
    %99 = vmatprep.subr.mxu0 0.0
    %100 = vmatpush1.xpose.msra.mxu0 0.0
    %101 = vmatprep.subr.mxu0 0.0
    %102 = vmatpush1.xpose.msra.mxu0 0.0
    %103 = vmatprep.subr.mxu0 0.0
    %104 = vmatpush1.xpose.msra.mxu0 0.0
    %105 = vmatprep.subr.mxu0 0.0
    %106 = vmatpush1.xpose.msra.mxu0 0.0
    %107 = vmatprep.subr.mxu0 0.0
    %108 = vmatpush1.xpose.msra.mxu0 0.0
    %109 = vmatprep.subr.mxu0 0.0
    %110 = vmatpush1.xpose.msra.mxu0 0.0
    %111 = vmatprep.subr.mxu0 0.0
    %112 = vmatpush1.xpose.msra.mxu0 0.0
    %113 = vmatprep.subr.mxu0 0.0
    %114 = vmatpush1.xpose.msra.mxu0 0.0
    %115 = vmatprep.subr.mxu0 0.0
    %116 = vmatpush1.xpose.msra.mxu0 0.0
    %117 = vmatprep.subr.mxu0 0.0
    %118 = vmatpush1.xpose.msra.mxu0 0.0
    %119 = vmatprep.subr.mxu0 0.0
    %120 = vmatpush1.xpose.msra.mxu0 0.0
    %121 = vmatprep.mubr.f32.mxu0 %v39
    %122 = vmatmul.mubr.f32.gmra.mrb[0].mxu0 %v38
    %v123 = vpop.f32.mrb[0].mxu0
    %v124 = vadd.f32 %v48, %v123
    %v125 = vpop.f32.mrb[0].mxu0
    %126 = vdwg.mxu0
    %127 = vmatprep.subr.mxu0 0.0
    %128 = vmatpush1.xpose.msra.mxu0 %v55
    %129 = vmatprep.subr.mxu0 0.0
    %130 = vmatpush1.xpose.msra.mxu0 0.0
    %131 = vmatprep.subr.mxu0 0.0
    %132 = vmatpush1.xpose.msra.mxu0 0.0
    %133 = vmatprep.subr.mxu0 0.0
    %134 = vmatpush1.xpose.msra.mxu0 0.0
    %135 = vmatprep.subr.mxu0 0.0
    %136 = vmatpush1.xpose.msra.mxu0 0.0
    %137 = vmatprep.subr.mxu0 0.0
    %138 = vmatpush1.xpose.msra.mxu0 0.0
    %139 = vmatprep.subr.mxu0 0.0
    %140 = vmatpush1.xpose.msra.mxu0 0.0
    %141 = vmatprep.subr.mxu0 0.0
    %142 = vmatpush1.xpose.msra.mxu0 0.0
    %143 = vmatprep.subr.mxu0 0.0
    %144 = vmatpush1.xpose.msra.mxu0 0.0
    %145 = vmatprep.subr.mxu0 0.0
    %146 = vmatpush1.xpose.msra.mxu0 0.0
    %147 = vmatprep.subr.mxu0 0.0
    %148 = vmatpush1.xpose.msra.mxu0 0.0
    %149 = vmatprep.subr.mxu0 0.0
    %150 = vmatpush1.xpose.msra.mxu0 0.0
    %151 = vmatprep.subr.mxu0 0.0
    %152 = vmatpush1.xpose.msra.mxu0 0.0
    %153 = vmatprep.subr.mxu0 0.0
    %154 = vmatpush1.xpose.msra.mxu0 0.0
    %155 = vmatprep.subr.mxu0 0.0
    %156 = vmatpush1.xpose.msra.mxu0 0.0
    %157 = vmatprep.subr.mxu0 0.0
    %158 = vmatpush1.xpose.msra.mxu0 0.0
    %159 = vmatprep.subr.mxu0 0.0
    %160 = vmatpush1.xpose.msra.mxu0 0.0
    %161 = vmatprep.subr.mxu0 0.0
    %162 = vmatpush1.xpose.msra.mxu0 0.0
    %163 = vmatprep.subr.mxu0 0.0
    %164 = vmatpush1.xpose.msra.mxu0 0.0
    %165 = vmatprep.subr.mxu0 0.0
    %166 = vmatpush1.xpose.msra.mxu0 0.0
    %167 = vmatprep.subr.mxu0 0.0
    %168 = vmatpush1.xpose.msra.mxu0 0.0
    %169 = vmatprep.subr.mxu0 0.0
    %170 = vmatpush1.xpose.msra.mxu0 0.0
    %171 = vmatprep.subr.mxu0 0.0
    %172 = vmatpush1.xpose.msra.mxu0 0.0
    %173 = vmatprep.subr.mxu0 0.0
    %174 = vmatpush1.xpose.msra.mxu0 0.0
    %175 = vmatprep.subr.mxu0 0.0
    %176 = vmatpush1.xpose.msra.mxu0 0.0
    %177 = vmatprep.subr.mxu0 0.0
    %178 = vmatpush1.xpose.msra.mxu0 0.0
    %179 = vmatprep.subr.mxu0 0.0
    %180 = vmatpush1.xpose.msra.mxu0 0.0
    %181 = vmatprep.subr.mxu0 0.0
    %182 = vmatpush1.xpose.msra.mxu0 0.0
    %183 = vmatprep.subr.mxu0 0.0
    %184 = vmatpush1.xpose.msra.mxu0 0.0
    %185 = vmatprep.subr.mxu0 0.0
    %186 = vmatpush1.xpose.msra.mxu0 0.0
    %187 = vmatprep.subr.mxu0 0.0
    %188 = vmatpush1.xpose.msra.mxu0 0.0
    %189 = vmatprep.subr.mxu0 0.0
    %190 = vmatpush1.xpose.msra.mxu0 0.0
    %191 = vmatprep.mubr.f32.mxu0 0.0
    %192 = vmatmul.mubr.f32.gmra.mrb[0].mxu0 %v52
    %v193 = vpop.f32.mrb[0].mxu0
    %v194 = vadd.f32 %v124, %v193
    %v195 = vpop.f32.mrb[0].mxu0
    %196 = vdwg.mxu0
    %vm197 = vcmask 64512
    %198 = vst.msk [vmem:[%s3] sm:$0xff] %vm197, %v194
    // Predicated region
    $region22: #{_forward.1} parent=1 // pred_check
      _
    $region23: #{_forward.1} parent=1 // pred_check_branch
      %200 = sbr.rel (0) target = $region25
    $region24: #{_forward.1} parent=1 // pred_region
      _
    $region25: #{_forward.1} parent=1 // pred_fallthru
      _
    // Predicated region
    $region26: #{_forward.1} parent=1 // pred_check
      _
    $region27: #{_forward.1} parent=1 // pred_check_branch
      %202 = sbr.rel (0) target = $region29
    $region28: #{_forward.1} parent=1 // pred_region
      _
    $region29: #{_forward.1} parent=1 // pred_fallthru
      _
    %203 = vsyncpa [#allocation3], 1
    %204 = vsyncpa [#allocation5], 1

</llo_original>
